<compile_context>
chip_gen: v7x
topology: tpu7x:2x2x1
jax: 0.10.0
libtpu: 0.0.40
codegen_flags: <defaults>
</compile_context>

<pallas_src>
import jax
import jax.numpy as jnp
from jax.experimental import pallas as pl
from jax.experimental.pallas import tpu as pltpu

LN_EPS = 1e-5  # torch.nn.LayerNorm default


def _layernorm(v, g, b):
    mu = jnp.mean(v, axis=-1, keepdims=True)
    var = jnp.mean((v - mu) ** 2, axis=-1, keepdims=True)
    return (v - mu) * jax.lax.rsqrt(var + LN_EPS) * g + b


def _gelu_exact(v):
    # F.gelu default (erf-based, exact)
    return 0.5 * v * (1.0 + jax.lax.erf(v * 0.7071067811865476))


def position_decoder_kernel(
    hm_ref,            # [tm, H, E]   E on lanes, H on sublanes
    w_head_ref,        # [1, H, E]    head weights pre-broadcast along E
    g0_ref, be0_ref,   # [1, E]
    w1_ref, b1_ref,    # [E, hid], [1, hid]
    g1_ref, be1_ref,   # [1, hid]
    w2_ref, b2_ref,    # [hid, hid], [1, hid]
    g2_ref, be2_ref,   # [1, hid]
    w3_ref,            # [hid, 4]
    b3_ref,            # [4, 1]
    scale_ref,         # [4, 1]  (image-size scaling, column form)
    out_ref,           # [4, tm]  lane-dense output tile
):
    # head_linear: VPU multiply + XLU sublane-reduce over H (K=8 is far too
    # small for the MXU).  head_linear bias omitted: it is a constant added
    # immediately before LayerNorm, which subtracts the mean (exact no-op).
    x = jnp.sum(hm_ref[...] * w_head_ref[...], axis=1)           # [tm, E]

    # layer 0: LN(E) -> Linear(E->hid) -> GELU
    h = _layernorm(x, g0_ref[...], be0_ref[...])
    h = _gelu_exact(
        jnp.dot(h, w1_ref[...], preferred_element_type=jnp.float32) + b1_ref[...]
    )
    # layer 1: LN(hid) -> Linear(hid->hid) -> GELU
    h = _layernorm(h, g1_ref[...], be1_ref[...])
    h = _gelu_exact(
        jnp.dot(h, w2_ref[...], preferred_element_type=jnp.float32) + b2_ref[...]
    )
    # layer 2: LN(hid) -> Linear(hid->4), emitted transposed so the output
    # block is [4, tm] (rows on lanes -> unmasked, lane-dense stores).
    h = _layernorm(h, g2_ref[...], be2_ref[...])
    y = jax.lax.dot_general(
        w3_ref[...], h,
        dimension_numbers=(((0,), (1,)), ((), ())),
        preferred_element_type=jnp.float32,
    ) + b3_ref[...]                                               # [4, tm]

    out_ref[...] = jax.nn.sigmoid(y) * scale_ref[...]


def _round_up(a, b):
    return (a + b - 1) // b * b


def position_decoder_forward(heatmap, params, image_size, *, tm=512):
    """heatmap: [num_layer, bs, num_heads, input_len, encoder_len] (float32)."""
    num_layer, bs, num_heads, input_len, encoder_len = heatmap.shape
    H = num_layer * num_heads
    E = encoder_len
    hid = params["w1"].shape[1]
    N = bs * input_len

    # Lane-dense layout: rows x H x E.  This permute only moves leading axes
    # (last axis E is preserved contiguous), so it is cheap in XLA.
    hm = jnp.transpose(heatmap, (1, 3, 0, 2, 4)).reshape(N, H, E)

    # Row tiling: single full tile for small N, else multiples of 128 so the
    # lane-dense [4, tm] output block satisfies the (8,128) constraint.
    if N <= tm:
        tm_eff = _round_up(N, 8)
    else:
        assert tm % 128 == 0, "tm must be a multiple of 128 when tiling rows"
        tm_eff = tm
    N_pad = _round_up(N, tm_eff)
    if N_pad != N:
        hm = jnp.pad(hm, ((0, N_pad - N), (0, 0), (0, 0)))

    # Head weights broadcast along E so the kernel does a pure elementwise
    # multiply + sublane reduce (no in-kernel reshapes/relayouts of constants).
    w_head_b = jnp.broadcast_to(
        params["w_head"].reshape(1, H, 1), (1, H, E)
    ).astype(jnp.float32)

    b3_col = params["b3"].reshape(-1, 1)                          # [4, 1]
    scale = jnp.array(
        [[image_size[1]], [image_size[0]], [image_size[1]], [image_size[0]]],
        dtype=jnp.float32,
    )                                                             # [4, 1]

    full = lambda r, c: pl.BlockSpec((r, c), lambda i: (0, 0))

    out = pl.pallas_call(
        position_decoder_kernel,
        out_shape=jax.ShapeDtypeStruct((4, N_pad), jnp.float32),
        grid_spec=pltpu.PrefetchScalarGridSpec(
            num_scalar_prefetch=0,
            grid=(N_pad // tm_eff,),
            in_specs=[
                pl.BlockSpec((tm_eff, H, E), lambda i: (i, 0, 0)),  # heatmap rows
                pl.BlockSpec((1, H, E), lambda i: (0, 0, 0)),       # head weights
                full(1, E), full(1, E),        # LN0
                full(E, hid), full(1, hid),    # Linear1
                full(1, hid), full(1, hid),    # LN1
                full(hid, hid), full(1, hid),  # Linear2
                full(1, hid), full(1, hid),    # LN2
                full(hid, 4),                  # Linear3 weight
                full(4, 1),                    # Linear3 bias (column)
                full(4, 1),                    # image-size scale (column)
            ],
            out_specs=pl.BlockSpec((4, tm_eff), lambda i: (0, i)),
        ),
        compiler_params=pltpu.CompilerParams(
            dimension_semantics=("parallel",),        # independent row tiles
            vmem_limit_bytes=48 * 1024 * 1024,        # headroom for large E / tm
        ),
    )(
        hm,
        w_head_b,
        params["g0"], params["be0"],
        params["w1"], params["b1"],
        params["g1"], params["be1"],
        params["w2"], params["b2"],
        params["g2"], params["be2"],
        params["w3"],
        b3_col,
        scale,
    )

    out = out[:, :N].reshape(4, bs, input_len)
    return out[0], out[1], out[2], out[3]


def reference_forward(heatmap, params, image_size):
    """Pure-JAX reference mirroring the PyTorch module (incl. head bias)."""
    num_layer, bs, num_heads, input_len, encoder_len = heatmap.shape
    hm = jnp.transpose(heatmap, (1, 3, 4, 0, 2)).reshape(
        bs, input_len, encoder_len, num_layer * num_heads
    )
    x = jnp.squeeze(hm @ params["w_head"], -1) + params["b_head"][0, 0]
    x = _layernorm(x, params["g0"][0], params["be0"][0])
    x = _gelu_exact(x @ params["w1"] + params["b1"][0])
    x = _layernorm(x, params["g1"][0], params["be1"][0])
    x = _gelu_exact(x @ params["w2"] + params["b2"][0])
    x = _layernorm(x, params["g2"][0], params["be2"][0])
    x = x @ params["w3"] + params["b3"][0]
    x = jax.nn.sigmoid(x)
    return (
        x[:, :, 0] * image_size[1],
        x[:, :, 1] * image_size[0],
        x[:, :, 2] * image_size[1],
        x[:, :, 3] * image_size[0],
    )


def init_params(key, *, heads_x_layers, input_dim, hidden_dim, output_dim):
    ks = jax.random.split(key, 8)
    f32 = jnp.float32
    return {
        "w_head": 0.1 * jax.random.normal(ks[0], (heads_x_layers, 1), f32),
        "b_head": jnp.full((1, 1), 0.01, f32),
        "g0": jnp.ones((1, input_dim), f32),
        "be0": jnp.zeros((1, input_dim), f32),
        "w1": 0.1 * jax.random.normal(ks[1], (input_dim, hidden_dim), f32),
        "b1": 0.01 * jax.random.normal(ks[2], (1, hidden_dim), f32),
        "g1": jnp.ones((1, hidden_dim), f32),
        "be1": jnp.zeros((1, hidden_dim), f32),
        "w2": 0.1 * jax.random.normal(ks[3], (hidden_dim, hidden_dim), f32),
        "b2": 0.01 * jax.random.normal(ks[4], (1, hidden_dim), f32),
        "g2": jnp.ones((1, hidden_dim), f32),
        "be2": jnp.zeros((1, hidden_dim), f32),
        "w3": 0.1 * jax.random.normal(ks[5], (hidden_dim, output_dim), f32),
        "b3": 0.01 * jax.random.normal(ks[6], (1, output_dim), f32),
    }


if __name__ == "__main__":
    # Small shapes consistent with the module's forward:
    #   heatmap: [num_layer, bs, num_heads, input_len, encoder_len]
    num_layer, bs, num_heads, input_len, encoder_len = 2, 2, 4, 8, 128
    hidden_dim, output_dim = 32, 4
    image_size = [896, 672]

    key = jax.random.PRNGKey(0)
    k_hm, k_p = jax.random.split(key)
    heatmap = jax.random.normal(
        k_hm, (num_layer, bs, num_heads, input_len, encoder_len), jnp.float32
    )
    params = init_params(
        k_p,
        heads_x_layers=num_layer * num_heads,
        input_dim=encoder_len,
        hidden_dim=hidden_dim,
        output_dim=output_dim,
    )

    outs = position_decoder_forward(heatmap, params, image_size)
    outs = jax.block_until_ready(outs)

    refs = reference_forward(heatmap, params, image_size)
    for o, r in zip(outs, refs):
        assert o.shape == (bs, input_len)
        if not jnp.allclose(o, r, atol=1e-3, rtol=1e-3):
            raise AssertionError("Pallas kernel mismatch vs JAX reference")

    print("KERNEL_OK")
</pallas_src>

<mosaic_0001>
module attributes {stable_mosaic.version = 11 : i64} {
  func.func @position_decoder_kernel(%arg0: i32, %arg1: memref<16x8x128xf32, #tpu.memory_space<vmem>>, %arg2: memref<1x8x128xf32, #tpu.memory_space<vmem>>, %arg3: memref<1x128xf32, #tpu.memory_space<vmem>>, %arg4: memref<1x128xf32, #tpu.memory_space<vmem>>, %arg5: memref<128x32xf32, #tpu.memory_space<vmem>>, %arg6: memref<1x32xf32, #tpu.memory_space<vmem>>, %arg7: memref<1x32xf32, #tpu.memory_space<vmem>>, %arg8: memref<1x32xf32, #tpu.memory_space<vmem>>, %arg9: memref<32x32xf32, #tpu.memory_space<vmem>>, %arg10: memref<1x32xf32, #tpu.memory_space<vmem>>, %arg11: memref<1x32xf32, #tpu.memory_space<vmem>>, %arg12: memref<1x32xf32, #tpu.memory_space<vmem>>, %arg13: memref<32x4xf32, #tpu.memory_space<vmem>>, %arg14: memref<4x1xf32, #tpu.memory_space<vmem>>, %arg15: memref<4x1xf32, #tpu.memory_space<vmem>>, %arg16: memref<4x16xf32, #tpu.memory_space<vmem>>) attributes {dimension_semantics = [#tpu.dimension_semantics<parallel>], iteration_bounds = array<i64: 1>, scalar_prefetch = 0 : i64, scratch_operands = 0 : i64, tpu.core_type = #tpu.core_type<tc>, window_params = [{transform_indices = @transform_0, window_bounds = array<i64: 16, 8, 128>}, {pipeline_mode = #tpu.pipeline_mode<synchronous>, transform_indices = @transform_1, window_bounds = array<i64: 1, 8, 128>}, {pipeline_mode = #tpu.pipeline_mode<synchronous>, transform_indices = @transform_2, window_bounds = array<i64: 1, 128>}, {pipeline_mode = #tpu.pipeline_mode<synchronous>, transform_indices = @transform_3, window_bounds = array<i64: 1, 128>}, {pipeline_mode = #tpu.pipeline_mode<synchronous>, transform_indices = @transform_4, window_bounds = array<i64: 128, 32>}, {pipeline_mode = #tpu.pipeline_mode<synchronous>, transform_indices = @transform_5, window_bounds = array<i64: 1, 32>}, {pipeline_mode = #tpu.pipeline_mode<synchronous>, transform_indices = @transform_6, window_bounds = array<i64: 1, 32>}, {pipeline_mode = #tpu.pipeline_mode<synchronous>, transform_indices = @transform_7, window_bounds = array<i64: 1, 32>}, {pipeline_mode = #tpu.pipeline_mode<synchronous>, transform_indices = @transform_8, window_bounds = array<i64: 32, 32>}, {pipeline_mode = #tpu.pipeline_mode<synchronous>, transform_indices = @transform_9, window_bounds = array<i64: 1, 32>}, {pipeline_mode = #tpu.pipeline_mode<synchronous>, transform_indices = @transform_10, window_bounds = array<i64: 1, 32>}, {pipeline_mode = #tpu.pipeline_mode<synchronous>, transform_indices = @transform_11, window_bounds = array<i64: 1, 32>}, {pipeline_mode = #tpu.pipeline_mode<synchronous>, transform_indices = @transform_12, window_bounds = array<i64: 32, 4>}, {pipeline_mode = #tpu.pipeline_mode<synchronous>, transform_indices = @transform_13, window_bounds = array<i64: 4, 1>}, {pipeline_mode = #tpu.pipeline_mode<synchronous>, transform_indices = @transform_14, window_bounds = array<i64: 4, 1>}, {transform_indices = @transform_15, window_bounds = array<i64: 4, 16>}]} {
    %c0 = arith.constant 0 : index
    %c0_0 = arith.constant 0 : index
    %c0_1 = arith.constant 0 : index
    %0 = vector.load %arg1[%c0, %c0_0, %c0_1] : memref<16x8x128xf32, #tpu.memory_space<vmem>>, vector<16x8x128xf32>
    %c0_2 = arith.constant 0 : index
    %c0_3 = arith.constant 0 : index
    %c0_4 = arith.constant 0 : index
    %1 = vector.load %arg2[%c0_2, %c0_3, %c0_4] : memref<1x8x128xf32, #tpu.memory_space<vmem>>, vector<1x8x128xf32>
    %2 = vector.broadcast %1 : vector<1x8x128xf32> to vector<16x8x128xf32>
    %3 = arith.mulf %0, %2 : vector<16x8x128xf32>
    %cst = arith.constant dense<0.000000e+00> : vector<16x128xf32>
    %4 = vector.multi_reduction <add>, %3, %cst [1] : vector<16x8x128xf32> to vector<16x128xf32>
    %c0_5 = arith.constant 0 : index
    %c0_6 = arith.constant 0 : index
    %5 = vector.load %arg3[%c0_5, %c0_6] : memref<1x128xf32, #tpu.memory_space<vmem>>, vector<1x128xf32>
    %c0_7 = arith.constant 0 : index
    %c0_8 = arith.constant 0 : index
    %6 = vector.load %arg4[%c0_7, %c0_8] : memref<1x128xf32, #tpu.memory_space<vmem>>, vector<1x128xf32>
    %cst_9 = arith.constant dense<0.000000e+00> : vector<16xf32>
    %7 = vector.multi_reduction <add>, %4, %cst_9 [1] : vector<16x128xf32> to vector<16xf32>
    %8 = vector.shape_cast %7 : vector<16xf32> to vector<16x1xf32>
    %cst_10 = arith.constant 1.280000e+02 : f32
    %9 = vector.broadcast %cst_10 : f32 to vector<16x1xf32>
    %10 = arith.divf %8, %9 : vector<16x1xf32>
    %11 = vector.broadcast %10 : vector<16x1xf32> to vector<16x128xf32>
    %12 = arith.subf %4, %11 : vector<16x128xf32>
    %13 = arith.mulf %12, %12 : vector<16x128xf32>
    %cst_11 = arith.constant dense<0.000000e+00> : vector<16xf32>
    %14 = vector.multi_reduction <add>, %13, %cst_11 [1] : vector<16x128xf32> to vector<16xf32>
    %15 = vector.shape_cast %14 : vector<16xf32> to vector<16x1xf32>
    %cst_12 = arith.constant 1.280000e+02 : f32
    %16 = vector.broadcast %cst_12 : f32 to vector<16x1xf32>
    %17 = arith.divf %15, %16 : vector<16x1xf32>
    %18 = vector.broadcast %10 : vector<16x1xf32> to vector<16x128xf32>
    %19 = arith.subf %4, %18 : vector<16x128xf32>
    %cst_13 = arith.constant 9.99999974E-6 : f32
    %20 = vector.broadcast %cst_13 : f32 to vector<16x1xf32>
    %21 = arith.addf %17, %20 : vector<16x1xf32>
    %22 = math.rsqrt %21 : vector<16x1xf32>
    %23 = vector.broadcast %22 : vector<16x1xf32> to vector<16x128xf32>
    %24 = arith.mulf %19, %23 : vector<16x128xf32>
    %25 = vector.broadcast %5 : vector<1x128xf32> to vector<16x128xf32>
    %26 = arith.mulf %24, %25 : vector<16x128xf32>
    %27 = vector.broadcast %6 : vector<1x128xf32> to vector<16x128xf32>
    %28 = arith.addf %26, %27 : vector<16x128xf32>
    %c0_14 = arith.constant 0 : index
    %c0_15 = arith.constant 0 : index
    %29 = vector.load %arg5[%c0_14, %c0_15] : memref<128x32xf32, #tpu.memory_space<vmem>>, vector<128x32xf32>
    %cst_16 = arith.constant dense<0.000000e+00> : vector<16x32xf32>
    %30 = tpu.matmul %28, %29, %cst_16 {dimension_numbers = #tpu.dot_dimension_numbers<[1], [0], [0], [1], [0, 0, 1, 1], [], []>} : vector<16x128xf32>, vector<128x32xf32>, vector<16x32xf32> -> vector<16x32xf32>
    %c0_17 = arith.constant 0 : index
    %c0_18 = arith.constant 0 : index
    %31 = vector.load %arg6[%c0_17, %c0_18] : memref<1x32xf32, #tpu.memory_space<vmem>>, vector<1x32xf32>
    %32 = vector.broadcast %31 : vector<1x32xf32> to vector<16x32xf32>
    %33 = arith.addf %30, %32 : vector<16x32xf32>
    %cst_19 = arith.constant 5.000000e-01 : f32
    %34 = vector.broadcast %cst_19 : f32 to vector<16x32xf32>
    %35 = arith.mulf %34, %33 : vector<16x32xf32>
    %cst_20 = arith.constant 0.707106769 : f32
    %36 = vector.broadcast %cst_20 : f32 to vector<16x32xf32>
    %37 = arith.mulf %33, %36 : vector<16x32xf32>
    %38 = math.erf %37 : vector<16x32xf32>
    %cst_21 = arith.constant 1.000000e+00 : f32
    %39 = vector.broadcast %cst_21 : f32 to vector<16x32xf32>
    %40 = arith.addf %39, %38 : vector<16x32xf32>
    %41 = arith.mulf %35, %40 : vector<16x32xf32>
    %c0_22 = arith.constant 0 : index
    %c0_23 = arith.constant 0 : index
    %42 = vector.load %arg7[%c0_22, %c0_23] : memref<1x32xf32, #tpu.memory_space<vmem>>, vector<1x32xf32>
    %c0_24 = arith.constant 0 : index
    %c0_25 = arith.constant 0 : index
    %43 = vector.load %arg8[%c0_24, %c0_25] : memref<1x32xf32, #tpu.memory_space<vmem>>, vector<1x32xf32>
    %cst_26 = arith.constant dense<0.000000e+00> : vector<16xf32>
    %44 = vector.multi_reduction <add>, %41, %cst_26 [1] : vector<16x32xf32> to vector<16xf32>
    %45 = vector.shape_cast %44 : vector<16xf32> to vector<16x1xf32>
    %cst_27 = arith.constant 3.200000e+01 : f32
    %46 = vector.broadcast %cst_27 : f32 to vector<16x1xf32>
    %47 = arith.divf %45, %46 : vector<16x1xf32>
    %48 = vector.broadcast %47 : vector<16x1xf32> to vector<16x32xf32>
    %49 = arith.subf %41, %48 : vector<16x32xf32>
    %50 = arith.mulf %49, %49 : vector<16x32xf32>
    %cst_28 = arith.constant dense<0.000000e+00> : vector<16xf32>
    %51 = vector.multi_reduction <add>, %50, %cst_28 [1] : vector<16x32xf32> to vector<16xf32>
    %52 = vector.shape_cast %51 : vector<16xf32> to vector<16x1xf32>
    %cst_29 = arith.constant 3.200000e+01 : f32
    %53 = vector.broadcast %cst_29 : f32 to vector<16x1xf32>
    %54 = arith.divf %52, %53 : vector<16x1xf32>
    %55 = vector.broadcast %47 : vector<16x1xf32> to vector<16x32xf32>
    %56 = arith.subf %41, %55 : vector<16x32xf32>
    %cst_30 = arith.constant 9.99999974E-6 : f32
    %57 = vector.broadcast %cst_30 : f32 to vector<16x1xf32>
    %58 = arith.addf %54, %57 : vector<16x1xf32>
    %59 = math.rsqrt %58 : vector<16x1xf32>
    %60 = vector.broadcast %59 : vector<16x1xf32> to vector<16x32xf32>
    %61 = arith.mulf %56, %60 : vector<16x32xf32>
    %62 = vector.broadcast %42 : vector<1x32xf32> to vector<16x32xf32>
    %63 = arith.mulf %61, %62 : vector<16x32xf32>
    %64 = vector.broadcast %43 : vector<1x32xf32> to vector<16x32xf32>
    %65 = arith.addf %63, %64 : vector<16x32xf32>
    %c0_31 = arith.constant 0 : index
    %c0_32 = arith.constant 0 : index
    %66 = vector.load %arg9[%c0_31, %c0_32] : memref<32x32xf32, #tpu.memory_space<vmem>>, vector<32x32xf32>
    %cst_33 = arith.constant dense<0.000000e+00> : vector<16x32xf32>
    %67 = tpu.matmul %65, %66, %cst_33 {dimension_numbers = #tpu.dot_dimension_numbers<[1], [0], [0], [1], [0, 0, 1, 1], [], []>} : vector<16x32xf32>, vector<32x32xf32>, vector<16x32xf32> -> vector<16x32xf32>
    %c0_34 = arith.constant 0 : index
    %c0_35 = arith.constant 0 : index
    %68 = vector.load %arg10[%c0_34, %c0_35] : memref<1x32xf32, #tpu.memory_space<vmem>>, vector<1x32xf32>
    %69 = vector.broadcast %68 : vector<1x32xf32> to vector<16x32xf32>
    %70 = arith.addf %67, %69 : vector<16x32xf32>
    %cst_36 = arith.constant 5.000000e-01 : f32
    %71 = vector.broadcast %cst_36 : f32 to vector<16x32xf32>
    %72 = arith.mulf %71, %70 : vector<16x32xf32>
    %cst_37 = arith.constant 0.707106769 : f32
    %73 = vector.broadcast %cst_37 : f32 to vector<16x32xf32>
    %74 = arith.mulf %70, %73 : vector<16x32xf32>
    %75 = math.erf %74 : vector<16x32xf32>
    %cst_38 = arith.constant 1.000000e+00 : f32
    %76 = vector.broadcast %cst_38 : f32 to vector<16x32xf32>
    %77 = arith.addf %76, %75 : vector<16x32xf32>
    %78 = arith.mulf %72, %77 : vector<16x32xf32>
    %c0_39 = arith.constant 0 : index
    %c0_40 = arith.constant 0 : index
    %79 = vector.load %arg11[%c0_39, %c0_40] : memref<1x32xf32, #tpu.memory_space<vmem>>, vector<1x32xf32>
    %c0_41 = arith.constant 0 : index
    %c0_42 = arith.constant 0 : index
    %80 = vector.load %arg12[%c0_41, %c0_42] : memref<1x32xf32, #tpu.memory_space<vmem>>, vector<1x32xf32>
    %cst_43 = arith.constant dense<0.000000e+00> : vector<16xf32>
    %81 = vector.multi_reduction <add>, %78, %cst_43 [1] : vector<16x32xf32> to vector<16xf32>
    %82 = vector.shape_cast %81 : vector<16xf32> to vector<16x1xf32>
    %cst_44 = arith.constant 3.200000e+01 : f32
    %83 = vector.broadcast %cst_44 : f32 to vector<16x1xf32>
    %84 = arith.divf %82, %83 : vector<16x1xf32>
    %85 = vector.broadcast %84 : vector<16x1xf32> to vector<16x32xf32>
    %86 = arith.subf %78, %85 : vector<16x32xf32>
    %87 = arith.mulf %86, %86 : vector<16x32xf32>
    %cst_45 = arith.constant dense<0.000000e+00> : vector<16xf32>
    %88 = vector.multi_reduction <add>, %87, %cst_45 [1] : vector<16x32xf32> to vector<16xf32>
    %89 = vector.shape_cast %88 : vector<16xf32> to vector<16x1xf32>
    %cst_46 = arith.constant 3.200000e+01 : f32
    %90 = vector.broadcast %cst_46 : f32 to vector<16x1xf32>
    %91 = arith.divf %89, %90 : vector<16x1xf32>
    %92 = vector.broadcast %84 : vector<16x1xf32> to vector<16x32xf32>
    %93 = arith.subf %78, %92 : vector<16x32xf32>
    %cst_47 = arith.constant 9.99999974E-6 : f32
    %94 = vector.broadcast %cst_47 : f32 to vector<16x1xf32>
    %95 = arith.addf %91, %94 : vector<16x1xf32>
    %96 = math.rsqrt %95 : vector<16x1xf32>
    %97 = vector.broadcast %96 : vector<16x1xf32> to vector<16x32xf32>
    %98 = arith.mulf %93, %97 : vector<16x32xf32>
    %99 = vector.broadcast %79 : vector<1x32xf32> to vector<16x32xf32>
    %100 = arith.mulf %98, %99 : vector<16x32xf32>
    %101 = vector.broadcast %80 : vector<1x32xf32> to vector<16x32xf32>
    %102 = arith.addf %100, %101 : vector<16x32xf32>
    %c0_48 = arith.constant 0 : index
    %c0_49 = arith.constant 0 : index
    %103 = vector.load %arg13[%c0_48, %c0_49] : memref<32x4xf32, #tpu.memory_space<vmem>>, vector<32x4xf32>
    %cst_50 = arith.constant dense<0.000000e+00> : vector<4x16xf32>
    %104 = tpu.matmul %103, %102, %cst_50 {dimension_numbers = #tpu.dot_dimension_numbers<[0], [1], [1], [0], [0, 1, 1, 0], [], []>} : vector<32x4xf32>, vector<16x32xf32>, vector<4x16xf32> -> vector<4x16xf32>
    %c0_51 = arith.constant 0 : index
    %c0_52 = arith.constant 0 : index
    %105 = vector.load %arg14[%c0_51, %c0_52] : memref<4x1xf32, #tpu.memory_space<vmem>>, vector<4x1xf32>
    %106 = vector.broadcast %105 : vector<4x1xf32> to vector<4x16xf32>
    %107 = arith.addf %104, %106 : vector<4x16xf32>
    %108 = arith.negf %107 : vector<4x16xf32>
    %109 = math.exp %108 : vector<4x16xf32>
    %cst_53 = arith.constant 1.000000e+00 : f32
    %110 = vector.broadcast %cst_53 : f32 to vector<4x16xf32>
    %111 = arith.addf %110, %109 : vector<4x16xf32>
    %112 = arith.divf %110, %111 : vector<4x16xf32>
    %c0_54 = arith.constant 0 : index
    %c0_55 = arith.constant 0 : index
    %113 = vector.load %arg15[%c0_54, %c0_55] : memref<4x1xf32, #tpu.memory_space<vmem>>, vector<4x1xf32>
    %114 = vector.broadcast %113 : vector<4x1xf32> to vector<4x16xf32>
    %115 = arith.mulf %112, %114 : vector<4x16xf32>
    %c0_56 = arith.constant 0 : index
    %c0_57 = arith.constant 0 : index
    %116 = vector.load %arg16[%c0_56, %c0_57] : memref<4x16xf32, #tpu.memory_space<vmem>>, vector<4x16xf32>
    tpu.vector_store %arg16[%c0_56, %c0_57], %115 {strides = array<i32>} : memref<4x16xf32, #tpu.memory_space<vmem>>, vector<4x16xf32>,
    return
  }
  func.func @transform_0(%arg0: i32) -> (i32, i32, i32) {
    %c0_i32 = arith.constant 0 : i32
    %c0_i32_0 = arith.constant 0 : i32
    %c0_i32_1 = arith.constant 0 : i32
    return %arg0, %c0_i32, %c0_i32_0 : i32, i32, i32
  }
  func.func @transform_1(%arg0: i32) -> (i32, i32, i32) {
    %c0_i32 = arith.constant 0 : i32
    %c0_i32_0 = arith.constant 0 : i32
    %c0_i32_1 = arith.constant 0 : i32
    %c0_i32_2 = arith.constant 0 : i32
    return %c0_i32, %c0_i32_0, %c0_i32_1 : i32, i32, i32
  }
  func.func @transform_2(%arg0: i32) -> (i32, i32) {
    %c0_i32 = arith.constant 0 : i32
    %c0_i32_0 = arith.constant 0 : i32
    %c0_i32_1 = arith.constant 0 : i32
    return %c0_i32, %c0_i32_0 : i32, i32
  }
  func.func @transform_3(%arg0: i32) -> (i32, i32) {
    %c0_i32 = arith.constant 0 : i32
    %c0_i32_0 = arith.constant 0 : i32
    %c0_i32_1 = arith.constant 0 : i32
    return %c0_i32, %c0_i32_0 : i32, i32
  }
  func.func @transform_4(%arg0: i32) -> (i32, i32) {
    %c0_i32 = arith.constant 0 : i32
    %c0_i32_0 = arith.constant 0 : i32
    %c0_i32_1 = arith.constant 0 : i32
    return %c0_i32, %c0_i32_0 : i32, i32
  }
  func.func @transform_5(%arg0: i32) -> (i32, i32) {
    %c0_i32 = arith.constant 0 : i32
    %c0_i32_0 = arith.constant 0 : i32
    %c0_i32_1 = arith.constant 0 : i32
    return %c0_i32, %c0_i32_0 : i32, i32
  }
  func.func @transform_6(%arg0: i32) -> (i32, i32) {
    %c0_i32 = arith.constant 0 : i32
    %c0_i32_0 = arith.constant 0 : i32
    %c0_i32_1 = arith.constant 0 : i32
    return %c0_i32, %c0_i32_0 : i32, i32
  }
  func.func @transform_7(%arg0: i32) -> (i32, i32) {
    %c0_i32 = arith.constant 0 : i32
    %c0_i32_0 = arith.constant 0 : i32
    %c0_i32_1 = arith.constant 0 : i32
    return %c0_i32, %c0_i32_0 : i32, i32
  }
  func.func @transform_8(%arg0: i32) -> (i32, i32) {
    %c0_i32 = arith.constant 0 : i32
    %c0_i32_0 = arith.constant 0 : i32
    %c0_i32_1 = arith.constant 0 : i32
    return %c0_i32, %c0_i32_0 : i32, i32
  }
  func.func @transform_9(%arg0: i32) -> (i32, i32) {
    %c0_i32 = arith.constant 0 : i32
    %c0_i32_0 = arith.constant 0 : i32
    %c0_i32_1 = arith.constant 0 : i32
    return %c0_i32, %c0_i32_0 : i32, i32
  }
  func.func @transform_10(%arg0: i32) -> (i32, i32) {
    %c0_i32 = arith.constant 0 : i32
    %c0_i32_0 = arith.constant 0 : i32
    %c0_i32_1 = arith.constant 0 : i32
    return %c0_i32, %c0_i32_0 : i32, i32
  }
  func.func @transform_11(%arg0: i32) -> (i32, i32) {
    %c0_i32 = arith.constant 0 : i32
    %c0_i32_0 = arith.constant 0 : i32
    %c0_i32_1 = arith.constant 0 : i32
    return %c0_i32, %c0_i32_0 : i32, i32
  }
  func.func @transform_12(%arg0: i32) -> (i32, i32) {
    %c0_i32 = arith.constant 0 : i32
    %c0_i32_0 = arith.constant 0 : i32
    %c0_i32_1 = arith.constant 0 : i32
    return %c0_i32, %c0_i32_0 : i32, i32
  }
  func.func @transform_13(%arg0: i32) -> (i32, i32) {
    %c0_i32 = arith.constant 0 : i32
    %c0_i32_0 = arith.constant 0 : i32
    %c0_i32_1 = arith.constant 0 : i32
    return %c0_i32, %c0_i32_0 : i32, i32
  }
  func.func @transform_14(%arg0: i32) -> (i32, i32) {
    %c0_i32 = arith.constant 0 : i32
    %c0_i32_0 = arith.constant 0 : i32
    %c0_i32_1 = arith.constant 0 : i32
    return %c0_i32, %c0_i32_0 : i32, i32
  }
  func.func @transform_15(%arg0: i32) -> (i32, i32) {
    %c0_i32 = arith.constant 0 : i32
    %c0_i32_0 = arith.constant 0 : i32
    return %c0_i32, %arg0 : i32, i32
  }
}

</mosaic_0001>

<llo_original>
// kernel: tpu_custom_call.1
$region0: #{tpu_custom_call.1}
  #allocation0 [shape = 'u32[]', space=smem, size = 0x4, offset = 0x4, fixed_abs, tag = 'smem constant byte address 0x4 - core index']
  #allocation1 [shape = 'u32[144,128]{1,0:T(1,128)}', space=vmem, size = 0x12000, scoped, tag = 'internal scratch']
  %s0 = inlined_call_operand.vmem [shape: f32[16,8,128], index: 0, kind: input, shape index: {}]
  %s1 = inlined_call_operand.vmem [shape: f32[1,8,128], index: 1, kind: input, shape index: {}]
  %s2 = inlined_call_operand.vmem [shape: f32[1,128], index: 2, kind: input, shape index: {}]
  %s3 = inlined_call_operand.vmem [shape: f32[1,128], index: 3, kind: input, shape index: {}]
  %s4 = inlined_call_operand.vmem [shape: f32[128,32], index: 4, kind: input, shape index: {}]
  %s5 = inlined_call_operand.vmem [shape: f32[1,32], index: 5, kind: input, shape index: {}]
  %s6 = inlined_call_operand.vmem [shape: f32[1,32], index: 6, kind: input, shape index: {}]
  %s7 = inlined_call_operand.vmem [shape: f32[1,32], index: 7, kind: input, shape index: {}]
  %s8 = inlined_call_operand.vmem [shape: f32[32,32], index: 8, kind: input, shape index: {}]
  %s9 = inlined_call_operand.vmem [shape: f32[1,32], index: 9, kind: input, shape index: {}]
  %s10 = inlined_call_operand.vmem [shape: f32[1,32], index: 10, kind: input, shape index: {}]
  %s11 = inlined_call_operand.vmem [shape: f32[1,32], index: 11, kind: input, shape index: {}]
  %s12 = inlined_call_operand.vmem [shape: f32[32,4], index: 12, kind: input, shape index: {}]
  %s13 = inlined_call_operand.vmem [shape: f32[4,1], index: 13, kind: input, shape index: {}]
  %s14 = inlined_call_operand.vmem [shape: f32[4,1], index: 14, kind: input, shape index: {}]
  %s15 = inlined_call_operand.hbm [shape: f32[4,16], index: 15, kind: output, shape index: {}]
  %s16 = sld [smem:[#allocation0]]
  $region70: #{tpu_custom_call.1} parent=0
    _
  %s18 = ssub.s32 1, %s16
  %s19 = scalar_select 0, %s18, %s16
  $region1: #{tpu_custom_call.1} parent=0
    #allocation2 [shape = 'u8[2048]{0}', space=vmem, size = 0x800, scoped, tag = 'output window, operand 0, single buffered']
    #allocation3 [shape = 's32[1]{0}', space=sflag, size = 0x4, scoped, tag = 'scoped memory for tpu_custom_call.1']
    %20 = vsyncpa [#allocation3], 0
    // Predicated region
    $region2: #{tpu_custom_call.1} parent=1 // pred_check
      _
    $region3: #{tpu_custom_call.1} parent=1 // pred_check_branch
      %22 = sbr.rel (0) target = $region5
    $region4: #{tpu_custom_call.1} parent=1 // pred_region
      _
    $region5: #{tpu_custom_call.1} parent=1 // pred_fallthru
      _
    // Predicated region
    $region6: #{tpu_custom_call.1} parent=1 // pred_check
      _
    $region7: #{tpu_custom_call.1} parent=1 // pred_check_branch
      %24 = sbr.rel (0) target = $region9
    $region8: #{tpu_custom_call.1} parent=1 // pred_region
      _
    $region9: #{tpu_custom_call.1} parent=1 // pred_fallthru
      _
    // Predicated region
    $region10: #{tpu_custom_call.1} parent=1 // pred_check
      _
    $region11: #{tpu_custom_call.1} parent=1 // pred_check_branch
      %26 = sbr.rel (0) target = $region13
    $region12: #{tpu_custom_call.1} parent=1 // pred_region
      _
    $region13: #{tpu_custom_call.1} parent=1 // pred_fallthru
      _
    // Predicated region
    $region14: #{tpu_custom_call.1} parent=1 // pred_check
      _
    $region15: #{tpu_custom_call.1} parent=1 // pred_check_branch
      %28 = sbr.rel (0) target = $region17
    $region16: #{tpu_custom_call.1} parent=1 // pred_region
      _
    $region17: #{tpu_custom_call.1} parent=1 // pred_fallthru
      _
    // Predicated region
    $region18: #{tpu_custom_call.1} parent=1 // pred_check
      _
    $region19: #{tpu_custom_call.1} parent=1 // pred_check_branch
      %30 = sbr.rel (0) target = $region21
    $region20: #{tpu_custom_call.1} parent=1 // pred_region
      _
    $region21: #{tpu_custom_call.1} parent=1 // pred_fallthru
      _
    // Predicated region
    $region22: #{tpu_custom_call.1} parent=1 // pred_check
      _
    $region23: #{tpu_custom_call.1} parent=1 // pred_check_branch
      %32 = sbr.rel (0) target = $region25
    $region24: #{tpu_custom_call.1} parent=1 // pred_region
      _
    $region25: #{tpu_custom_call.1} parent=1 // pred_fallthru
      _
    // Predicated region
    $region26: #{tpu_custom_call.1} parent=1 // pred_check
      _
    $region27: #{tpu_custom_call.1} parent=1 // pred_check_branch
      %34 = sbr.rel (0) target = $region29
    $region28: #{tpu_custom_call.1} parent=1 // pred_region
      _
    $region29: #{tpu_custom_call.1} parent=1 // pred_fallthru
      _
    // Predicated region
    $region30: #{tpu_custom_call.1} parent=1 // pred_check
      _
    $region31: #{tpu_custom_call.1} parent=1 // pred_check_branch
      %36 = sbr.rel (0) target = $region33
    $region32: #{tpu_custom_call.1} parent=1 // pred_region
      _
    $region33: #{tpu_custom_call.1} parent=1 // pred_fallthru
      _
    // Predicated region
    $region34: #{tpu_custom_call.1} parent=1 // pred_check
      _
    $region35: #{tpu_custom_call.1} parent=1 // pred_check_branch
      %38 = sbr.rel (0) target = $region37
    $region36: #{tpu_custom_call.1} parent=1 // pred_region
      _
    $region37: #{tpu_custom_call.1} parent=1 // pred_fallthru
      _
    // Predicated region
    $region38: #{tpu_custom_call.1} parent=1 // pred_check
      _
    $region39: #{tpu_custom_call.1} parent=1 // pred_check_branch
      %40 = sbr.rel (0) target = $region41
    $region40: #{tpu_custom_call.1} parent=1 // pred_region
      _
    $region41: #{tpu_custom_call.1} parent=1 // pred_fallthru
      _
    // Predicated region
    $region42: #{tpu_custom_call.1} parent=1 // pred_check
      _
    $region43: #{tpu_custom_call.1} parent=1 // pred_check_branch
      %42 = sbr.rel (0) target = $region45
    $region44: #{tpu_custom_call.1} parent=1 // pred_region
      _
    $region45: #{tpu_custom_call.1} parent=1 // pred_fallthru
      _
    // Predicated region
    $region46: #{tpu_custom_call.1} parent=1 // pred_check
      _
    $region47: #{tpu_custom_call.1} parent=1 // pred_check_branch
      %44 = sbr.rel (0) target = $region49
    $region48: #{tpu_custom_call.1} parent=1 // pred_region
      _
    $region49: #{tpu_custom_call.1} parent=1 // pred_fallthru
      _
    // Predicated region
    $region50: #{tpu_custom_call.1} parent=1 // pred_check
      _
    $region51: #{tpu_custom_call.1} parent=1 // pred_check_branch
      %46 = sbr.rel (0) target = $region53
    $region52: #{tpu_custom_call.1} parent=1 // pred_region
      _
    $region53: #{tpu_custom_call.1} parent=1 // pred_fallthru
      _
    // Predicated region
    $region54: #{tpu_custom_call.1} parent=1 // pred_check
      _
    $region55: #{tpu_custom_call.1} parent=1 // pred_check_branch
      %48 = sbr.rel (0) target = $region57
    $region56: #{tpu_custom_call.1} parent=1 // pred_region
      _
    $region57: #{tpu_custom_call.1} parent=1 // pred_fallthru
      _
    // Predicated region
    $region58: #{tpu_custom_call.1} parent=1 // pred_check
      _
    $region59: #{tpu_custom_call.1} parent=1 // pred_check_branch
      %50 = sbr.rel (0) target = $region61
    $region60: #{tpu_custom_call.1} parent=1 // pred_region
      _
    $region61: #{tpu_custom_call.1} parent=1 // pred_fallthru
      _
    %v51 = vld [vmem:[%s0] sm:$0xff]
    %v52 = vld [vmem:[%s0 + $0x8] sm:$0xff]
    %v53 = vld [vmem:[%s0 + $0x10] sm:$0xff]
    %v54 = vld [vmem:[%s0 + $0x18] sm:$0xff]
    %v55 = vld [vmem:[%s0 + $0x20] sm:$0xff]
    %v56 = vld [vmem:[%s0 + $0x28] sm:$0xff]
    %v57 = vld [vmem:[%s0 + $0x30] sm:$0xff]
    %v58 = vld [vmem:[%s0 + $0x38] sm:$0xff]
    %v59 = vld [vmem:[%s0 + $0x40] sm:$0xff]
    %v60 = vld [vmem:[%s0 + $0x48] sm:$0xff]
    %v61 = vld [vmem:[%s0 + $0x50] sm:$0xff]
    %v62 = vld [vmem:[%s0 + $0x58] sm:$0xff]
    %v63 = vld [vmem:[%s0 + $0x60] sm:$0xff]
    %v64 = vld [vmem:[%s0 + $0x68] sm:$0xff]
    %v65 = vld [vmem:[%s0 + $0x70] sm:$0xff]
    %v66 = vld [vmem:[%s0 + $0x78] sm:$0xff]
    %v67 = vld [vmem:[%s1] sm:$0xff]
    %v68 = vmul.f32 %v51, %v67
    %v69 = vmul.f32 %v52, %v67
    %v70 = vmul.f32 %v53, %v67
    %v71 = vmul.f32 %v54, %v67
    %v72 = vmul.f32 %v55, %v67
    %v73 = vmul.f32 %v56, %v67
    %v74 = vmul.f32 %v57, %v67
    %v75 = vmul.f32 %v58, %v67
    %v76 = vmul.f32 %v59, %v67
    %v77 = vmul.f32 %v60, %v67
    %v78 = vmul.f32 %v61, %v67
    %v79 = vmul.f32 %v62, %v67
    %v80 = vmul.f32 %v63, %v67
    %v81 = vmul.f32 %v64, %v67
    %v82 = vmul.f32 %v65, %v67
    %v83 = vmul.f32 %v66, %v67
    %v84 = vrot.slane %v68, 4
    %v85 = vadd.f32 %v68, %v84
    %v86 = vrot.slane %v85, 2
    %v87 = vadd.f32 %v85, %v86
    %v88 = vrot.slane %v87, 1
    %v89 = vadd.f32 %v87, %v88
    %v90 = vrot.slane %v69, 4
    %v91 = vadd.f32 %v69, %v90
    %v92 = vrot.slane %v91, 2
    %v93 = vadd.f32 %v91, %v92
    %v94 = vrot.slane %v93, 1
    %v95 = vadd.f32 %v93, %v94
    %v96 = vrot.slane %v70, 4
    %v97 = vadd.f32 %v70, %v96
    %v98 = vrot.slane %v97, 2
    %v99 = vadd.f32 %v97, %v98
    %v100 = vrot.slane %v99, 1
    %v101 = vadd.f32 %v99, %v100
    %v102 = vrot.slane %v71, 4
    %v103 = vadd.f32 %v71, %v102
    %v104 = vrot.slane %v103, 2
    %v105 = vadd.f32 %v103, %v104
    %v106 = vrot.slane %v105, 1
    %v107 = vadd.f32 %v105, %v106
    %v108 = vrot.slane %v72, 4
    %v109 = vadd.f32 %v72, %v108
    %v110 = vrot.slane %v109, 2
    %v111 = vadd.f32 %v109, %v110
    %v112 = vrot.slane %v111, 1
    %v113 = vadd.f32 %v111, %v112
    %v114 = vrot.slane %v73, 4
    %v115 = vadd.f32 %v73, %v114
    %v116 = vrot.slane %v115, 2
    %v117 = vadd.f32 %v115, %v116
    %v118 = vrot.slane %v117, 1
    %v119 = vadd.f32 %v117, %v118
    %v120 = vrot.slane %v74, 4
    %v121 = vadd.f32 %v74, %v120
    %v122 = vrot.slane %v121, 2
    %v123 = vadd.f32 %v121, %v122
    %v124 = vrot.slane %v123, 1
    %v125 = vadd.f32 %v123, %v124
    %v126 = vrot.slane %v75, 4
    %v127 = vadd.f32 %v75, %v126
    %v128 = vrot.slane %v127, 2
    %v129 = vadd.f32 %v127, %v128
    %v130 = vrot.slane %v129, 1
    %v131 = vadd.f32 %v129, %v130
    %v132 = vrot.slane %v76, 4
    %v133 = vadd.f32 %v76, %v132
    %v134 = vrot.slane %v133, 2
    %v135 = vadd.f32 %v133, %v134
    %v136 = vrot.slane %v135, 1
    %v137 = vadd.f32 %v135, %v136
    %v138 = vrot.slane %v77, 4
    %v139 = vadd.f32 %v77, %v138
    %v140 = vrot.slane %v139, 2
    %v141 = vadd.f32 %v139, %v140
    %v142 = vrot.slane %v141, 1
    %v143 = vadd.f32 %v141, %v142
    %v144 = vrot.slane %v78, 4
    %v145 = vadd.f32 %v78, %v144
    %v146 = vrot.slane %v145, 2
    %v147 = vadd.f32 %v145, %v146
    %v148 = vrot.slane %v147, 1
    %v149 = vadd.f32 %v147, %v148
    %v150 = vrot.slane %v79, 4
    %v151 = vadd.f32 %v79, %v150
    %v152 = vrot.slane %v151, 2
    %v153 = vadd.f32 %v151, %v152
    %v154 = vrot.slane %v153, 1
    %v155 = vadd.f32 %v153, %v154
    %v156 = vrot.slane %v80, 4
    %v157 = vadd.f32 %v80, %v156
    %v158 = vrot.slane %v157, 2
    %v159 = vadd.f32 %v157, %v158
    %v160 = vrot.slane %v159, 1
    %v161 = vadd.f32 %v159, %v160
    %v162 = vrot.slane %v81, 4
    %v163 = vadd.f32 %v81, %v162
    %v164 = vrot.slane %v163, 2
    %v165 = vadd.f32 %v163, %v164
    %v166 = vrot.slane %v165, 1
    %v167 = vadd.f32 %v165, %v166
    %v168 = vrot.slane %v82, 4
    %v169 = vadd.f32 %v82, %v168
    %v170 = vrot.slane %v169, 2
    %v171 = vadd.f32 %v169, %v170
    %v172 = vrot.slane %v171, 1
    %v173 = vadd.f32 %v171, %v172
    %v174 = vrot.slane %v83, 4
    %v175 = vadd.f32 %v83, %v174
    %v176 = vrot.slane %v175, 2
    %v177 = vadd.f32 %v175, %v176
    %v178 = vrot.slane %v177, 1
    %v179 = vadd.f32 %v177, %v178
    %v180 = vld [vmem:[%s2] sm:$0x1]
    %v181 = vld [vmem:[%s3] sm:$0x1]
    %vm198 = vcmask 1041409
    %v199 = vsel %vm198, %v95, %v89
    %vm200 = vcmask 1042434
    %v201 = vsel %vm200, %v101, %v199
    %vm202 = vcmask 1043459
    %v203 = vsel %vm202, %v107, %v201
    %vm204 = vcmask 1044484
    %v205 = vsel %vm204, %v113, %v203
    %vm206 = vcmask 1045509
    %v207 = vsel %vm206, %v119, %v205
    %vm208 = vcmask 1046534
    %v209 = vsel %vm208, %v125, %v207
    %vm210 = vcmask 1047559
    %v211 = vsel %vm210, %v131, %v209
    %v212 = vsel %vm198, %v143, %v137
    %v213 = vsel %vm200, %v149, %v212
    %v214 = vsel %vm202, %v155, %v213
    %v215 = vsel %vm204, %v161, %v214
    %v216 = vsel %vm206, %v167, %v215
    %v217 = vsel %vm208, %v173, %v216
    %v218 = vsel %vm210, %v179, %v217
    %221 = vadd.xlane.f32.xlu0 %v211
    %v222 = vpop.xlane.xlu0 %221
    %223 = vadd.xlane.f32.xlu0 %v218
    %v224 = vpop.xlane.xlu0 %223
    %v225 = vrcp.pop 128.0
    %v226 = vmul.f32 %v222, %v225
    %v227 = vmul.f32 %v224, %v225
    %v230 = vrot.slane %v226, 1
    %v231 = vrot.slane %v226, 2
    %v232 = vrot.slane %v226, 3
    %v233 = vrot.slane %v226, 4
    %v234 = vrot.slane %v226, 5
    %v235 = vrot.slane %v226, 6
    %v236 = vrot.slane %v226, 7
    %v237 = vrot.slane %v227, 1
    %v238 = vrot.slane %v227, 2
    %v239 = vrot.slane %v227, 3
    %v240 = vrot.slane %v227, 4
    %v241 = vrot.slane %v227, 5
    %v242 = vrot.slane %v227, 6
    %v243 = vrot.slane %v227, 7
    %v260 = vsub.f32 %v89, %v226
    %v261 = vsub.f32 %v95, %v230
    %v262 = vsub.f32 %v101, %v231
    %v263 = vsub.f32 %v107, %v232
    %v264 = vsub.f32 %v113, %v233
    %v265 = vsub.f32 %v119, %v234
    %v266 = vsub.f32 %v125, %v235
    %v267 = vsub.f32 %v131, %v236
    %v268 = vsub.f32 %v137, %v227
    %v269 = vsub.f32 %v143, %v237
    %v270 = vsub.f32 %v149, %v238
    %v271 = vsub.f32 %v155, %v239
    %v272 = vsub.f32 %v161, %v240
    %v273 = vsub.f32 %v167, %v241
    %v274 = vsub.f32 %v173, %v242
    %v275 = vsub.f32 %v179, %v243
    %v276 = vmul.f32 %v260, %v260
    %v277 = vmul.f32 %v261, %v261
    %v278 = vmul.f32 %v262, %v262
    %v279 = vmul.f32 %v263, %v263
    %v280 = vmul.f32 %v264, %v264
    %v281 = vmul.f32 %v265, %v265
    %v282 = vmul.f32 %v266, %v266
    %v283 = vmul.f32 %v267, %v267
    %v284 = vmul.f32 %v268, %v268
    %v285 = vmul.f32 %v269, %v269
    %v286 = vmul.f32 %v270, %v270
    %v287 = vmul.f32 %v271, %v271
    %v288 = vmul.f32 %v272, %v272
    %v289 = vmul.f32 %v273, %v273
    %v290 = vmul.f32 %v274, %v274
    %v291 = vmul.f32 %v275, %v275
    %v308 = vrot.slane %v277, 7
    %v309 = vsel %vm198, %v308, %v276
    %v310 = vrot.slane %v278, 6
    %v311 = vsel %vm200, %v310, %v309
    %v312 = vrot.slane %v279, 5
    %v313 = vsel %vm202, %v312, %v311
    %v314 = vrot.slane %v280, 4
    %v315 = vsel %vm204, %v314, %v313
    %v316 = vrot.slane %v281, 3
    %v317 = vsel %vm206, %v316, %v315
    %v318 = vrot.slane %v282, 2
    %v319 = vsel %vm208, %v318, %v317
    %v320 = vrot.slane %v283, 1
    %v321 = vsel %vm210, %v320, %v319
    %v322 = vrot.slane %v285, 7
    %v323 = vsel %vm198, %v322, %v284
    %v324 = vrot.slane %v286, 6
    %v325 = vsel %vm200, %v324, %v323
    %v326 = vrot.slane %v287, 5
    %v327 = vsel %vm202, %v326, %v325
    %v328 = vrot.slane %v288, 4
    %v329 = vsel %vm204, %v328, %v327
    %v330 = vrot.slane %v289, 3
    %v331 = vsel %vm206, %v330, %v329
    %v332 = vrot.slane %v290, 2
    %v333 = vsel %vm208, %v332, %v331
    %v334 = vrot.slane %v291, 1
    %v335 = vsel %vm210, %v334, %v333
    %338 = vadd.xlane.f32.xlu0 %v321
    %v339 = vpop.xlane.xlu0 %338
    %340 = vadd.xlane.f32.xlu0 %v335
    %v341 = vpop.xlane.xlu0 %340
    %v342 = vmul.f32 %v339, %v225
    %v343 = vmul.f32 %v341, %v225
    %v344 = vadd.f32 %v342, 1e-05
    %v345 = vadd.f32 %v343, 1e-05
    %v346 = vrsqrt.pop %v344
    %v347 = vrsqrt.pop %v345
    %v350 = vrot.slane %v346, 1
    %v351 = vrot.slane %v346, 2
    %v352 = vrot.slane %v346, 3
    %v353 = vrot.slane %v346, 4
    %v354 = vrot.slane %v346, 5
    %v355 = vrot.slane %v346, 6
    %v356 = vrot.slane %v346, 7
    %v357 = vrot.slane %v347, 1
    %v358 = vrot.slane %v347, 2
    %v359 = vrot.slane %v347, 3
    %v360 = vrot.slane %v347, 4
    %v361 = vrot.slane %v347, 5
    %v362 = vrot.slane %v347, 6
    %v363 = vrot.slane %v347, 7
    %v380 = vmul.f32 %v260, %v346
    %v381 = vmul.f32 %v261, %v350
    %v382 = vmul.f32 %v262, %v351
    %v383 = vmul.f32 %v263, %v352
    %v384 = vmul.f32 %v264, %v353
    %v385 = vmul.f32 %v265, %v354
    %v386 = vmul.f32 %v266, %v355
    %v387 = vmul.f32 %v267, %v356
    %v388 = vmul.f32 %v268, %v347
    %v389 = vmul.f32 %v269, %v357
    %v390 = vmul.f32 %v270, %v358
    %v391 = vmul.f32 %v271, %v359
    %v392 = vmul.f32 %v272, %v360
    %v393 = vmul.f32 %v273, %v361
    %v394 = vmul.f32 %v274, %v362
    %v395 = vmul.f32 %v275, %v363
    %v397 = vlaneseq
    %v398 = vshrl.u32 %v397, 7
    %v399 = vsub.s32 0, %v398
    %v400 = vrot.slane %v180, %v399
    %v402 = vmul.f32 %v380, %v400
    %v403 = vmul.f32 %v381, %v400
    %v404 = vmul.f32 %v382, %v400
    %v405 = vmul.f32 %v383, %v400
    %v406 = vmul.f32 %v384, %v400
    %v407 = vmul.f32 %v385, %v400
    %v408 = vmul.f32 %v386, %v400
    %v409 = vmul.f32 %v387, %v400
    %v410 = vmul.f32 %v388, %v400
    %v411 = vmul.f32 %v389, %v400
    %v412 = vmul.f32 %v390, %v400
    %v413 = vmul.f32 %v391, %v400
    %v414 = vmul.f32 %v392, %v400
    %v415 = vmul.f32 %v393, %v400
    %v416 = vmul.f32 %v394, %v400
    %v417 = vmul.f32 %v395, %v400
    %v419 = vlaneseq
    %v420 = vshrl.u32 %v419, 7
    %v421 = vsub.s32 0, %v420
    %v422 = vrot.slane %v181, %v421
    %v424 = vadd.f32 %v402, %v422
    %v425 = vadd.f32 %v403, %v422
    %v426 = vadd.f32 %v404, %v422
    %v427 = vadd.f32 %v405, %v422
    %v428 = vadd.f32 %v406, %v422
    %v429 = vadd.f32 %v407, %v422
    %v430 = vadd.f32 %v408, %v422
    %v431 = vadd.f32 %v409, %v422
    %v432 = vadd.f32 %v410, %v422
    %v433 = vadd.f32 %v411, %v422
    %v434 = vadd.f32 %v412, %v422
    %v435 = vadd.f32 %v413, %v422
    %v436 = vadd.f32 %v414, %v422
    %v437 = vadd.f32 %v415, %v422
    %v438 = vadd.f32 %v416, %v422
    %v439 = vadd.f32 %v417, %v422
    %v440 = vld [vmem:[%s4] sm:$0xff]
    %v441 = vld [vmem:[%s4 + $0x8] sm:$0xff]
    %v442 = vld [vmem:[%s4 + $0x10] sm:$0xff]
    %v443 = vld [vmem:[%s4 + $0x18] sm:$0xff]
    %v444 = vld [vmem:[%s4 + $0x20] sm:$0xff]
    %v445 = vld [vmem:[%s4 + $0x28] sm:$0xff]
    %v446 = vld [vmem:[%s4 + $0x30] sm:$0xff]
    %v447 = vld [vmem:[%s4 + $0x38] sm:$0xff]
    %v448 = vld [vmem:[%s4 + $0x40] sm:$0xff]
    %v449 = vld [vmem:[%s4 + $0x48] sm:$0xff]
    %v450 = vld [vmem:[%s4 + $0x50] sm:$0xff]
    %v451 = vld [vmem:[%s4 + $0x58] sm:$0xff]
    %v452 = vld [vmem:[%s4 + $0x60] sm:$0xff]
    %v453 = vld [vmem:[%s4 + $0x68] sm:$0xff]
    %v454 = vld [vmem:[%s4 + $0x70] sm:$0xff]
    %v455 = vld [vmem:[%s4 + $0x78] sm:$0xff]
    %v456 = vld [vmem:[%s5] sm:$0x1]
    %v458 = vlaneseq
    %v459 = vshrl.u32 %v458, 7
    %v460 = vsub.s32 0, %v459
    %v461 = vrot.slane %v456, %v460
    %v479 = vrot.slane %v425, 7
    %v480 = vsel %vm198, %v479, %v424
    %v481 = vrot.slane %v426, 6
    %v482 = vsel %vm200, %v481, %v480
    %v483 = vrot.slane %v427, 5
    %v484 = vsel %vm202, %v483, %v482
    %v485 = vrot.slane %v428, 4
    %v486 = vsel %vm204, %v485, %v484
    %v487 = vrot.slane %v429, 3
    %v488 = vsel %vm206, %v487, %v486
    %v489 = vrot.slane %v430, 2
    %v490 = vsel %vm208, %v489, %v488
    %v491 = vrot.slane %v431, 1
    %v492 = vsel %vm210, %v491, %v490
    %v493 = vrot.slane %v433, 7
    %v494 = vsel %vm198, %v493, %v432
    %v495 = vrot.slane %v434, 6
    %v496 = vsel %vm200, %v495, %v494
    %v497 = vrot.slane %v435, 5
    %v498 = vsel %vm202, %v497, %v496
    %v499 = vrot.slane %v436, 4
    %v500 = vsel %vm204, %v499, %v498
    %v501 = vrot.slane %v437, 3
    %v502 = vsel %vm206, %v501, %v500
    %v503 = vrot.slane %v438, 2
    %v504 = vsel %vm208, %v503, %v502
    %v505 = vrot.slane %v439, 1
    %v506 = vsel %vm210, %v505, %v504
    %509 = vmatprep.subr.mxu0 0.0
    %510 = vmatpush1.msra.mxu0 %v440
    %511 = vmatprep.subr.mxu0 0.0
    %512 = vmatpush1.msra.mxu0 %v441
    %513 = vmatprep.subr.mxu0 0.0
    %514 = vmatpush1.msra.mxu0 %v442
    %515 = vmatprep.subr.mxu0 0.0
    %516 = vmatpush1.msra.mxu0 %v443
    %517 = vmatprep.subr.mxu0 0.0
    %518 = vmatpush1.msra.mxu0 %v444
    %519 = vmatprep.subr.mxu0 0.0
    %520 = vmatpush1.msra.mxu0 %v445
    %521 = vmatprep.subr.mxu0 0.0
    %522 = vmatpush1.msra.mxu0 %v446
    %523 = vmatprep.subr.mxu0 0.0
    %524 = vmatpush1.msra.mxu0 %v447
    %525 = vmatprep.subr.mxu0 0.0
    %526 = vmatpush1.msra.mxu0 %v448
    %527 = vmatprep.subr.mxu0 0.0
    %528 = vmatpush1.msra.mxu0 %v449
    %529 = vmatprep.subr.mxu0 0.0
    %530 = vmatpush1.msra.mxu0 %v450
    %531 = vmatprep.subr.mxu0 0.0
    %532 = vmatpush1.msra.mxu0 %v451
    %533 = vmatprep.subr.mxu0 0.0
    %534 = vmatpush1.msra.mxu0 %v452
    %535 = vmatprep.subr.mxu0 0.0
    %536 = vmatpush1.msra.mxu0 %v453
    %537 = vmatprep.subr.mxu0 0.0
    %538 = vmatpush1.msra.mxu0 %v454
    %539 = vmatprep.subr.mxu0 0.0
    %540 = vmatpush1.msra.mxu0 %v455
    %541 = vmatprep.subr.mxu0 0.0
    %542 = vmatpush1.msra.mxu0 0.0
    %543 = vmatprep.subr.mxu0 0.0
    %544 = vmatpush1.msra.mxu0 0.0
    %545 = vmatprep.subr.mxu0 0.0
    %546 = vmatpush1.msra.mxu0 0.0
    %547 = vmatprep.subr.mxu0 0.0
    %548 = vmatpush1.msra.mxu0 0.0
    %549 = vmatprep.subr.mxu0 0.0
    %550 = vmatpush1.msra.mxu0 0.0
    %551 = vmatprep.subr.mxu0 0.0
    %552 = vmatpush1.msra.mxu0 0.0
    %553 = vmatprep.subr.mxu0 0.0
    %554 = vmatpush1.msra.mxu0 0.0
    %555 = vmatprep.subr.mxu0 0.0
    %556 = vmatpush1.msra.mxu0 0.0
    %557 = vmatprep.subr.mxu0 0.0
    %558 = vmatpush1.msra.mxu0 0.0
    %559 = vmatprep.subr.mxu0 0.0
    %560 = vmatpush1.msra.mxu0 0.0
    %561 = vmatprep.subr.mxu0 0.0
    %562 = vmatpush1.msra.mxu0 0.0
    %563 = vmatprep.subr.mxu0 0.0
    %564 = vmatpush1.msra.mxu0 0.0
    %565 = vmatprep.subr.mxu0 0.0
    %566 = vmatpush1.msra.mxu0 0.0
    %567 = vmatprep.subr.mxu0 0.0
    %568 = vmatpush1.msra.mxu0 0.0
    %569 = vmatprep.subr.mxu0 0.0
    %570 = vmatpush1.msra.mxu0 0.0
    %571 = vmatprep.subr.mxu0 0.0
    %572 = vmatpush1.msra.mxu0 0.0
    %573 = vmatprep.mubr.f32.mxu0 0.0
    %574 = vmatmul.mubr.f32.gmra.mrb[0].mxu0 %v492
    %v575 = vpop.f32.mrb[0].mxu0
    %v576 = vadd.f32 %v461, %v575
    %v577 = vpop.f32.mrb[0].mxu0
    %578 = vmatprep.mubr.f32.mxu0 0.0
    %579 = vmatmul.mubr.f32.gmra.mrb[0].mxu0 %v506
    %v580 = vpop.f32.mrb[0].mxu0
    %v581 = vadd.f32 %v461, %v580
    %v582 = vpop.f32.mrb[0].mxu0
    %583 = vdwg.mxu0
    %v584 = vmul.f32 %v576, 0.5
    %v585 = vmul.f32 %v581, 0.5
    %v586 = vmul.f32 %v576, 0.70710677
    %v587 = vmul.f32 %v581, 0.70710677
    %v588 = verf.f32.pop %v586
    %v589 = verf.f32.pop %v587
    %v590 = vadd.f32 %v588, 1.0
    %v591 = vadd.f32 %v589, 1.0
    %v592 = vmul.f32 %v584, %v590
    %v593 = vmul.f32 %v585, %v591
    %v594 = vld [vmem:[%s6] sm:$0x1]
    %v595 = vld [vmem:[%s7] sm:$0x1]
    %vm596 = vcmask 261120
    %v597 = vsel %vm596, %v592, 0.0
    %598 = vadd.xlane.f32.xlu0 %v597
    %v599 = vpop.xlane.xlu0 %598
    %v600 = vsel %vm596, %v593, 0.0
    %601 = vadd.xlane.f32.xlu0 %v600
    %v602 = vpop.xlane.xlu0 %601
    %v603 = vrcp.pop 32.0
    %v604 = vmul.f32 %v599, %v603
    %v605 = vmul.f32 %v602, %v603
    %v606 = vsub.f32 %v592, %v604
    %v607 = vsub.f32 %v593, %v605
    %v608 = vmul.f32 %v606, %v606
    %v609 = vmul.f32 %v607, %v607
    %v610 = vsel %vm596, %v608, 0.0
    %611 = vadd.xlane.f32.xlu0 %v610
    %v612 = vpop.xlane.xlu0 %611
    %v613 = vsel %vm596, %v609, 0.0
    %614 = vadd.xlane.f32.xlu0 %v613
    %v615 = vpop.xlane.xlu0 %614
    %v616 = vmul.f32 %v612, %v603
    %v617 = vmul.f32 %v615, %v603
    %v618 = vadd.f32 %v616, 1e-05
    %v619 = vadd.f32 %v617, 1e-05
    %v620 = vrsqrt.pop %v618
    %v621 = vrsqrt.pop %v619
    %v622 = vmul.f32 %v606, %v620
    %v623 = vmul.f32 %v607, %v621
    %v625 = vlaneseq
    %v626 = vshrl.u32 %v625, 7
    %v627 = vsub.s32 0, %v626
    %v628 = vrot.slane %v594, %v627
    %v630 = vmul.f32 %v622, %v628
    %v631 = vmul.f32 %v623, %v628
    %v633 = vlaneseq
    %v634 = vshrl.u32 %v633, 7
    %v635 = vsub.s32 0, %v634
    %v636 = vrot.slane %v595, %v635
    %v638 = vadd.f32 %v630, %v636
    %v639 = vadd.f32 %v631, %v636
    %v640 = vld [vmem:[%s8] sm:$0xff]
    %v641 = vld [vmem:[%s8 + $0x8] sm:$0xff]
    %v642 = vld [vmem:[%s8 + $0x10] sm:$0xff]
    %v643 = vld [vmem:[%s8 + $0x18] sm:$0xff]
    %v644 = vld [vmem:[%s9] sm:$0x1]
    %v646 = vlaneseq
    %v647 = vshrl.u32 %v646, 7
    %v648 = vsub.s32 0, %v647
    %v649 = vrot.slane %v644, %v648
    %v652 = vsel %vm596, %v638, 0
    %v655 = vsel %vm596, %v639, 0
    %657 = vmatprep.subr.mxu0 0.0
    %658 = vmatpush1.msra.mxu0 %v640
    %659 = vmatprep.subr.mxu0 0.0
    %660 = vmatpush1.msra.mxu0 %v641
    %661 = vmatprep.subr.mxu0 0.0
    %662 = vmatpush1.msra.mxu0 %v642
    %663 = vmatprep.subr.mxu0 0.0
    %664 = vmatpush1.msra.mxu0 %v643
    %665 = vmatprep.subr.mxu0 0.0
    %666 = vmatpush1.msra.mxu0 0.0
    %667 = vmatprep.subr.mxu0 0.0
    %668 = vmatpush1.msra.mxu0 0.0
    %669 = vmatprep.subr.mxu0 0.0
    %670 = vmatpush1.msra.mxu0 0.0
    %671 = vmatprep.subr.mxu0 0.0
    %672 = vmatpush1.msra.mxu0 0.0
    %673 = vmatprep.subr.mxu0 0.0
    %674 = vmatpush1.msra.mxu0 0.0
    %675 = vmatprep.subr.mxu0 0.0
    %676 = vmatpush1.msra.mxu0 0.0
    %677 = vmatprep.subr.mxu0 0.0
    %678 = vmatpush1.msra.mxu0 0.0
    %679 = vmatprep.subr.mxu0 0.0
    %680 = vmatpush1.msra.mxu0 0.0
    %681 = vmatprep.subr.mxu0 0.0
    %682 = vmatpush1.msra.mxu0 0.0
    %683 = vmatprep.subr.mxu0 0.0
    %684 = vmatpush1.msra.mxu0 0.0
    %685 = vmatprep.subr.mxu0 0.0
    %686 = vmatpush1.msra.mxu0 0.0
    %687 = vmatprep.subr.mxu0 0.0
    %688 = vmatpush1.msra.mxu0 0.0
    %689 = vmatprep.subr.mxu0 0.0
    %690 = vmatpush1.msra.mxu0 0.0
    %691 = vmatprep.subr.mxu0 0.0
    %692 = vmatpush1.msra.mxu0 0.0
    %693 = vmatprep.subr.mxu0 0.0
    %694 = vmatpush1.msra.mxu0 0.0
    %695 = vmatprep.subr.mxu0 0.0
    %696 = vmatpush1.msra.mxu0 0.0
    %697 = vmatprep.subr.mxu0 0.0
    %698 = vmatpush1.msra.mxu0 0.0
    %699 = vmatprep.subr.mxu0 0.0
    %700 = vmatpush1.msra.mxu0 0.0
    %701 = vmatprep.subr.mxu0 0.0
    %702 = vmatpush1.msra.mxu0 0.0
    %703 = vmatprep.subr.mxu0 0.0
    %704 = vmatpush1.msra.mxu0 0.0
    %705 = vmatprep.subr.mxu0 0.0
    %706 = vmatpush1.msra.mxu0 0.0
    %707 = vmatprep.subr.mxu0 0.0
    %708 = vmatpush1.msra.mxu0 0.0
    %709 = vmatprep.subr.mxu0 0.0
    %710 = vmatpush1.msra.mxu0 0.0
    %711 = vmatprep.subr.mxu0 0.0
    %712 = vmatpush1.msra.mxu0 0.0
    %713 = vmatprep.subr.mxu0 0.0
    %714 = vmatpush1.msra.mxu0 0.0
    %715 = vmatprep.subr.mxu0 0.0
    %716 = vmatpush1.msra.mxu0 0.0
    %717 = vmatprep.subr.mxu0 0.0
    %718 = vmatpush1.msra.mxu0 0.0
    %719 = vmatprep.subr.mxu0 0.0
    %720 = vmatpush1.msra.mxu0 0.0
    %721 = vmatprep.mubr.f32.mxu0 0.0
    %722 = vmatmul.mubr.f32.gmra.mrb[0].mxu0 %v652
    %v723 = vpop.f32.mrb[0].mxu0
    %v724 = vadd.f32 %v649, %v723
    %v725 = vpop.f32.mrb[0].mxu0
    %726 = vmatprep.mubr.f32.mxu0 0.0
    %727 = vmatmul.mubr.f32.gmra.mrb[0].mxu0 %v655
    %v728 = vpop.f32.mrb[0].mxu0
    %v729 = vadd.f32 %v649, %v728
    %v730 = vpop.f32.mrb[0].mxu0
    %731 = vdwg.mxu0
    %v732 = vmul.f32 %v724, 0.5
    %v733 = vmul.f32 %v729, 0.5
    %v734 = vmul.f32 %v724, 0.70710677
    %v735 = vmul.f32 %v729, 0.70710677
    %v736 = verf.f32.pop %v734
    %v737 = verf.f32.pop %v735
    %v738 = vadd.f32 %v736, 1.0
    %v739 = vadd.f32 %v737, 1.0
    %v740 = vmul.f32 %v732, %v738
    %v741 = vmul.f32 %v733, %v739
    %v742 = vld [vmem:[%s10] sm:$0x1]
    %v743 = vld [vmem:[%s11] sm:$0x1]
    %v744 = vsel %vm596, %v740, 0.0
    %745 = vadd.xlane.f32.xlu0 %v744
    %v746 = vpop.xlane.xlu0 %745
    %v747 = vsel %vm596, %v741, 0.0
    %748 = vadd.xlane.f32.xlu0 %v747
    %v749 = vpop.xlane.xlu0 %748
    %v750 = vmul.f32 %v746, %v603
    %v751 = vmul.f32 %v749, %v603
    %v752 = vsub.f32 %v740, %v750
    %v753 = vsub.f32 %v741, %v751
    %v754 = vmul.f32 %v752, %v752
    %v755 = vmul.f32 %v753, %v753
    %v756 = vsel %vm596, %v754, 0.0
    %757 = vadd.xlane.f32.xlu0 %v756
    %v758 = vpop.xlane.xlu0 %757
    %v759 = vsel %vm596, %v755, 0.0
    %760 = vadd.xlane.f32.xlu0 %v759
    %v761 = vpop.xlane.xlu0 %760
    %v762 = vmul.f32 %v758, %v603
    %v763 = vmul.f32 %v761, %v603
    %v764 = vadd.f32 %v762, 1e-05
    %v765 = vadd.f32 %v763, 1e-05
    %v766 = vrsqrt.pop %v764
    %v767 = vrsqrt.pop %v765
    %v768 = vmul.f32 %v752, %v766
    %v769 = vmul.f32 %v753, %v767
    %v771 = vlaneseq
    %v772 = vshrl.u32 %v771, 7
    %v773 = vsub.s32 0, %v772
    %v774 = vrot.slane %v742, %v773
    %v776 = vmul.f32 %v768, %v774
    %v777 = vmul.f32 %v769, %v774
    %v779 = vlaneseq
    %v780 = vshrl.u32 %v779, 7
    %v781 = vsub.s32 0, %v780
    %v782 = vrot.slane %v743, %v781
    %v784 = vadd.f32 %v776, %v782
    %v785 = vadd.f32 %v777, %v782
    %v786 = vld [vmem:[%s12] sm:$0xff]
    %v787 = vld [vmem:[%s12 + $0x8] sm:$0xff]
    %v788 = vld [vmem:[%s12 + $0x10] sm:$0xff]
    %v789 = vld [vmem:[%s12 + $0x18] sm:$0xff]
    %v790 = vld [vmem:[%s13] sm:$0xf]
    %792 = vset.pattern.permute.xlu0 0
    %793 = vperm.xlu0 %792, %v790
    %v794 = vpop.permute.xlu0 %793
    %796 = vxpose.xlu0.b32.start [1/16] %v786, 128
    %797 = vxpose.xlu0.b32.cont [2/16] %v787, 128
    %798 = vxpose.xlu0.b32.cont [3/16] %v788, 128
    %799 = vxpose.xlu0.b32.cont [4/16] %v789, 128
    %800 = vxpose.xlu0.b32.cont [5/16] 0.0, 128
    %801 = vxpose.xlu0.b32.cont [6/16] 0.0, 128
    %802 = vxpose.xlu0.b32.cont [7/16] 0.0, 128
    %803 = vxpose.xlu0.b32.cont [8/16] 0.0, 128
    %804 = vxpose.xlu0.b32.cont [9/16] 0.0, 128
    %805 = vxpose.xlu0.b32.cont [10/16] 0.0, 128
    %806 = vxpose.xlu0.b32.cont [11/16] 0.0, 128
    %807 = vxpose.xlu0.b32.cont [12/16] 0.0, 128
    %808 = vxpose.xlu0.b32.cont [13/16] 0.0, 128
    %809 = vxpose.xlu0.b32.cont [14/16] 0.0, 128
    %810 = vxpose.xlu0.b32.cont [15/16] 0.0, 128
    %811 = vxpose.xlu0.b32.end [16/16] 0.0, 128
    %v812 = vpop.trf.xlu0
    %v813 = vpop.trf.xlu0
    %v814 = vpop.trf.xlu0
    %v815 = vpop.trf.xlu0
    %v816 = vpop.trf.xlu0
    %v817 = vpop.trf.xlu0
    %v818 = vpop.trf.xlu0
    %v819 = vpop.trf.xlu0
    %v820 = vpop.trf.xlu0
    %v821 = vpop.trf.xlu0
    %v822 = vpop.trf.xlu0
    %v823 = vpop.trf.xlu0
    %v824 = vpop.trf.xlu0
    %v825 = vpop.trf.xlu0
    %v826 = vpop.trf.xlu0
    %v827 = vpop.trf.xlu0
    %v829 = vsel %vm596, %v812, 0
    %v832 = vsel %vm596, %v784, 0
    %v835 = vsel %vm596, %v785, 0
    %837 = vmatprep.subr.mxu0 0.0
    %838 = vmatpush1.xpose.msra.mxu0 %v832
    %839 = vmatprep.subr.mxu0 0.0
    %840 = vmatpush1.xpose.msra.mxu0 %v835
    %841 = vmatprep.subr.mxu0 0.0
    %842 = vmatpush1.xpose.msra.mxu0 0.0
    %843 = vmatprep.subr.mxu0 0.0
    %844 = vmatpush1.xpose.msra.mxu0 0.0
    %845 = vmatprep.subr.mxu0 0.0
    %846 = vmatpush1.xpose.msra.mxu0 0.0
    %847 = vmatprep.subr.mxu0 0.0
    %848 = vmatpush1.xpose.msra.mxu0 0.0
    %849 = vmatprep.subr.mxu0 0.0
    %850 = vmatpush1.xpose.msra.mxu0 0.0
    %851 = vmatprep.subr.mxu0 0.0
    %852 = vmatpush1.xpose.msra.mxu0 0.0
    %853 = vmatprep.subr.mxu0 0.0
    %854 = vmatpush1.xpose.msra.mxu0 0.0
    %855 = vmatprep.subr.mxu0 0.0
    %856 = vmatpush1.xpose.msra.mxu0 0.0
    %857 = vmatprep.subr.mxu0 0.0
    %858 = vmatpush1.xpose.msra.mxu0 0.0
    %859 = vmatprep.subr.mxu0 0.0
    %860 = vmatpush1.xpose.msra.mxu0 0.0
    %861 = vmatprep.subr.mxu0 0.0
    %862 = vmatpush1.xpose.msra.mxu0 0.0
    %863 = vmatprep.subr.mxu0 0.0
    %864 = vmatpush1.xpose.msra.mxu0 0.0
    %865 = vmatprep.subr.mxu0 0.0
    %866 = vmatpush1.xpose.msra.mxu0 0.0
    %867 = vmatprep.subr.mxu0 0.0
    %868 = vmatpush1.xpose.msra.mxu0 0.0
    %869 = vmatprep.subr.mxu0 0.0
    %870 = vmatpush1.xpose.msra.mxu0 0.0
    %871 = vmatprep.subr.mxu0 0.0
    %872 = vmatpush1.xpose.msra.mxu0 0.0
    %873 = vmatprep.subr.mxu0 0.0
    %874 = vmatpush1.xpose.msra.mxu0 0.0
    %875 = vmatprep.subr.mxu0 0.0
    %876 = vmatpush1.xpose.msra.mxu0 0.0
    %877 = vmatprep.subr.mxu0 0.0
    %878 = vmatpush1.xpose.msra.mxu0 0.0
    %879 = vmatprep.subr.mxu0 0.0
    %880 = vmatpush1.xpose.msra.mxu0 0.0
    %881 = vmatprep.subr.mxu0 0.0
    %882 = vmatpush1.xpose.msra.mxu0 0.0
    %883 = vmatprep.subr.mxu0 0.0
    %884 = vmatpush1.xpose.msra.mxu0 0.0
    %885 = vmatprep.subr.mxu0 0.0
    %886 = vmatpush1.xpose.msra.mxu0 0.0
    %887 = vmatprep.subr.mxu0 0.0
    %888 = vmatpush1.xpose.msra.mxu0 0.0
    %889 = vmatprep.subr.mxu0 0.0
    %890 = vmatpush1.xpose.msra.mxu0 0.0
    %891 = vmatprep.subr.mxu0 0.0
    %892 = vmatpush1.xpose.msra.mxu0 0.0
    %893 = vmatprep.subr.mxu0 0.0
    %894 = vmatpush1.xpose.msra.mxu0 0.0
    %895 = vmatprep.subr.mxu0 0.0
    %896 = vmatpush1.xpose.msra.mxu0 0.0
    %897 = vmatprep.subr.mxu0 0.0
    %898 = vmatpush1.xpose.msra.mxu0 0.0
    %899 = vmatprep.subr.mxu0 0.0
    %900 = vmatpush1.xpose.msra.mxu0 0.0
    %901 = vmatprep.mubr.f32.mxu0 0.0
    %902 = vmatmul.mubr.f32.gmra.mrb[0].mxu0 %v829
    %v903 = vpop.f32.mrb[0].mxu0
    %v904 = vadd.f32 %v794, %v903
    %v905 = vpop.f32.mrb[0].mxu0
    %906 = vdwg.mxu0
    %v907 = vxor.u32 %v904, 2147483648
    %v908 = vmul.f32 %v907, 1.442695
    %v909 = vpow.pop %v908
    %v910 = vadd.f32 %v909, 1.0
    %v911 = vrcp.pop %v910
    %v912 = vmul.f32 1.0, %v911
    %v913 = vld [vmem:[%s14] sm:$0xf]
    %915 = vset.pattern.permute.xlu0 0
    %916 = vperm.xlu0 %915, %v913
    %v917 = vpop.permute.xlu0 %916
    %v919 = vmul.f32 %v912, %v917
    %vm920 = vcmask 125952
    %921 = vst.msk [vmem:[#allocation2] sm:$0xf] %vm920, %v919
    // Predicated region
    $region62: #{tpu_custom_call.1} parent=1 // pred_check
      _
    $region63: #{tpu_custom_call.1} parent=1 // pred_check_branch
      %923 = sbr.rel (0) target = $region65
    $region64: #{tpu_custom_call.1} parent=1 // pred_region
      %s925 = ssub.s32 64, 64
      %926 = vsyncadd [#allocation3], %s925
      %s928 = sshll.u32 [#allocation2], 4
      %s929 = int_to_ptr.vmem [resolvable:$true] %s928
      %931 = dma.vmem_to_hbm [thread:$0]  %s929, 64, %s15, [#allocation3]
    $region65: #{tpu_custom_call.1} parent=1 // pred_fallthru
      _
    // Predicated region
    $region66: #{tpu_custom_call.1} parent=1 // pred_check
      _
    $region67: #{tpu_custom_call.1} parent=1 // pred_check_branch
      %933 = sbr.rel (0) target = $region69
    $region68: #{tpu_custom_call.1} parent=1 // pred_region
      %934 = dma.done [#allocation3], 64
    $region69: #{tpu_custom_call.1} parent=1 // pred_fallthru
      _
    %935 = vsyncpa [#allocation3], 1

</llo_original>
